<compile_context>
chip_gen: v5e
topology: v5e:2x2
jax: 0.10.0
libtpu: 0.0.40
codegen_flags: <defaults>
</compile_context>

<pallas_src>
import jax
import jax.numpy as jnp
from jax.experimental import pallas as pl
from jax.experimental.pallas import tpu as pltpu

_LANE = 128
_SUBLANE = 8


def geodesic_loss_kernel(p_ref, t_ref, o_ref):
    i = pl.program_id(0)

    @pl.when(i == 0)
    def _():
        o_ref[...] = jnp.zeros_like(o_ref)

    # Component-major layout: p_ref / t_ref are (4, tile_rows, 128); each
    # component slice is a dense (tile_rows, 128) f32 tile.
    px = p_ref[0].astype(jnp.float32)
    py = p_ref[1].astype(jnp.float32)
    pz = p_ref[2].astype(jnp.float32)
    pw = p_ref[3].astype(jnp.float32)
    tx = t_ref[0].astype(jnp.float32)
    ty = t_ref[1].astype(jnp.float32)
    tz = t_ref[2].astype(jnp.float32)
    tw = t_ref[3].astype(jnp.float32)

    # scipy from_quat normalizes; explicit component sums stay on the VPU
    # (no cross-lane reduce), rsqrt goes to the otherwise-idle EUP slot.
    p_inv_norm = jax.lax.rsqrt(px * px + py * py + pz * pz + pw * pw)
    t_inv_norm = jax.lax.rsqrt(tx * tx + ty * ty + tz * tz + tw * tw)
    px, py, pz, pw = px * p_inv_norm, py * p_inv_norm, pz * p_inv_norm, pw * p_inv_norm
    tx, ty, tz, tw = tx * t_inv_norm, ty * t_inv_norm, tz * t_inv_norm, tw * t_inv_norm

    # prediction.inv(): conjugate of the unit quaternion.
    ax, ay, az, aw = -px, -py, -pz, pw

    # Relative rotation r = p_inv * t (scipy quaternion composition, [x,y,z,w]).
    rx = aw * tx + tw * ax + (ay * tz - az * ty)
    ry = aw * ty + tw * ay + (az * tx - ax * tz)
    rz = aw * tz + tw * az + (ax * ty - ay * tx)
    rw = aw * tw - ax * tx - ay * ty - az * tz

    # Rotation.magnitude(): angle in [0, pi].
    vec_norm = jnp.sqrt(rx * rx + ry * ry + rz * rz)
    angle = 2.0 * jnp.arctan2(vec_norm, jnp.abs(rw))
    angle_sq = angle * angle  # (tile_rows, 128)

    # Accumulate this tile's partial sum into the resident (1, 1) output block.
    o_ref[...] += jnp.sum(angle_sq, keepdims=True)


def geodesic_loss(prediction, target, *, max_tile_rows=256):
    """mean(geodesic_angle(pred.inv() * target) ** 2) over the batch."""
    b = prediction.shape[0]
    p = prediction.reshape(b, 4).astype(jnp.float32)
    t = target.reshape(b, 4).astype(jnp.float32)

    # Tile sizing: rows of 128 quaternions, rounded up to a sublane multiple.
    rows_needed = pl.cdiv(b, _LANE)
    rows_needed = pl.cdiv(rows_needed, _SUBLANE) * _SUBLANE
    tile_rows = min(max_tile_rows, rows_needed)
    num_tiles = pl.cdiv(rows_needed, tile_rows)
    padded_rows = num_tiles * tile_rows
    padded_b = padded_rows * _LANE

    pad = padded_b - b
    if pad:
        # Identity quaternions contribute exactly zero angle -> no mask needed.
        ident = jnp.zeros((pad, 4), jnp.float32).at[:, 3].set(1.0)
        p = jnp.concatenate([p, ident], axis=0)
        t = jnp.concatenate([t, ident], axis=0)

    # Lane-dense, component-major layout: (4, padded_rows, 128).
    p3 = p.T.reshape(4, padded_rows, _LANE)
    t3 = t.T.reshape(4, padded_rows, _LANE)

    total = pl.pallas_call(
        geodesic_loss_kernel,
        out_shape=jax.ShapeDtypeStruct((1, 1), jnp.float32),
        grid_spec=pltpu.PrefetchScalarGridSpec(
            num_scalar_prefetch=0,
            grid=(num_tiles,),
            in_specs=[
                pl.BlockSpec((4, tile_rows, _LANE), lambda i: (0, i, 0)),
                pl.BlockSpec((4, tile_rows, _LANE), lambda i: (0, i, 0)),
            ],
            out_specs=pl.BlockSpec((1, 1), lambda i: (0, 0)),
        ),
        compiler_params=pltpu.CompilerParams(
            dimension_semantics=("arbitrary",),
            vmem_limit_bytes=32 * 1024 * 1024,
        ),
    )(p3, t3)

    # Divide by the TRUE batch size (padded entries contributed exactly 0).
    return total[0, 0] / jnp.float32(b)


def _reference(prediction, target):
    # Pure-JAX reference of the same math (for a sanity check).
    b = prediction.shape[0]
    p = prediction.reshape(b, 4).astype(jnp.float32)
    t = target.reshape(b, 4).astype(jnp.float32)
    p = p / jnp.linalg.norm(p, axis=-1, keepdims=True)
    t = t / jnp.linalg.norm(t, axis=-1, keepdims=True)
    px, py, pz, pw = p[:, 0], p[:, 1], p[:, 2], p[:, 3]
    tx, ty, tz, tw = t[:, 0], t[:, 1], t[:, 2], t[:, 3]
    ax, ay, az, aw = -px, -py, -pz, pw
    rx = aw * tx + tw * ax + (ay * tz - az * ty)
    ry = aw * ty + tw * ay + (az * tx - ax * tz)
    rz = aw * tz + tw * az + (ax * ty - ay * tx)
    rw = aw * tw - ax * tx - ay * ty - az * tz
    angle = 2.0 * jnp.arctan2(jnp.sqrt(rx * rx + ry * ry + rz * rz), jnp.abs(rw))
    return jnp.mean(angle * angle)


if __name__ == "__main__":
    key = jax.random.PRNGKey(0)
    kp, kt, kp2, kt2 = jax.random.split(key, 4)

    # Small case: batch=8 (exercises identity padding of the remainder).
    batch = 8
    prediction = jax.random.normal(kp, (batch, 4), dtype=jnp.float32)
    target = jax.random.normal(kt, (batch, 4), dtype=jnp.float32)
    loss = geodesic_loss(prediction, target)
    jax.block_until_ready(loss)
    ref = _reference(prediction, target)
    assert jnp.allclose(loss, ref, rtol=1e-4, atol=1e-5), (loss, ref)

    # Multi-tile case: forces a >1 grid to exercise the accumulation path.
    batch2 = 2500
    prediction2 = jax.random.normal(kp2, (batch2, 4), dtype=jnp.float32)
    target2 = jax.random.normal(kt2, (batch2, 4), dtype=jnp.float32)
    loss2 = geodesic_loss(prediction2, target2, max_tile_rows=8)
    jax.block_until_ready(loss2)
    ref2 = _reference(prediction2, target2)
    assert jnp.allclose(loss2, ref2, rtol=1e-4, atol=1e-5), (loss2, ref2)

    print("KERNEL_OK")
</pallas_src>

<mosaic_0001>
module attributes {stable_mosaic.version = 11 : i64} {
  func.func @geodesic_loss_kernel(%arg0: i32, %arg1: memref<4x8x128xf32, #tpu.memory_space<vmem>>, %arg2: memref<4x8x128xf32, #tpu.memory_space<vmem>>, %arg3: memref<1x1xf32, #tpu.memory_space<vmem>>) attributes {dimension_semantics = [#tpu.dimension_semantics<arbitrary>], iteration_bounds = array<i64: 1>, scalar_prefetch = 0 : i64, scratch_operands = 0 : i64, tpu.core_type = #tpu.core_type<tc>, window_params = [{transform_indices = @transform_0, window_bounds = array<i64: 4, 8, 128>}, {transform_indices = @transform_1, window_bounds = array<i64: 4, 8, 128>}, {pipeline_mode = #tpu.pipeline_mode<synchronous>, transform_indices = @transform_2, window_bounds = array<i64: 1, 1>}]} {
    %c0_i32 = arith.constant 0 : i32
    %0 = arith.cmpi eq, %arg0, %c0_i32 : i32
    %1 = arith.extui %0 : i1 to i32
    %c0_i32_0 = arith.constant 0 : i32
    %2 = arith.cmpi ne, %1, %c0_i32_0 : i32
    scf.if %2 {
      %cst_29 = arith.constant 0.000000e+00 : f32
      %96 = vector.broadcast %cst_29 : f32 to vector<1x1xf32>
      %c0_30 = arith.constant 0 : index
      %c0_31 = arith.constant 0 : index
      %97 = vector.load %arg3[%c0_30, %c0_31] : memref<1x1xf32, #tpu.memory_space<vmem>>, vector<1x1xf32>
      tpu.vector_store %arg3[%c0_30, %c0_31], %96 {strides = array<i32>} : memref<1x1xf32, #tpu.memory_space<vmem>>, vector<1x1xf32>,
    } else {
    }
    %c0 = arith.constant 0 : index
    %c0_1 = arith.constant 0 : index
    %c0_2 = arith.constant 0 : index
    %3 = vector.load %arg1[%c0, %c0_1, %c0_2] : memref<4x8x128xf32, #tpu.memory_space<vmem>>, vector<1x8x128xf32>
    %4 = vector.shape_cast %3 : vector<1x8x128xf32> to vector<8x128xf32>
    %c1 = arith.constant 1 : index
    %c0_3 = arith.constant 0 : index
    %c0_4 = arith.constant 0 : index
    %5 = vector.load %arg1[%c1, %c0_3, %c0_4] : memref<4x8x128xf32, #tpu.memory_space<vmem>>, vector<1x8x128xf32>
    %6 = vector.shape_cast %5 : vector<1x8x128xf32> to vector<8x128xf32>
    %c2 = arith.constant 2 : index
    %c0_5 = arith.constant 0 : index
    %c0_6 = arith.constant 0 : index
    %7 = vector.load %arg1[%c2, %c0_5, %c0_6] : memref<4x8x128xf32, #tpu.memory_space<vmem>>, vector<1x8x128xf32>
    %8 = vector.shape_cast %7 : vector<1x8x128xf32> to vector<8x128xf32>
    %c3 = arith.constant 3 : index
    %c0_7 = arith.constant 0 : index
    %c0_8 = arith.constant 0 : index
    %9 = vector.load %arg1[%c3, %c0_7, %c0_8] : memref<4x8x128xf32, #tpu.memory_space<vmem>>, vector<1x8x128xf32>
    %10 = vector.shape_cast %9 : vector<1x8x128xf32> to vector<8x128xf32>
    %c0_9 = arith.constant 0 : index
    %c0_10 = arith.constant 0 : index
    %c0_11 = arith.constant 0 : index
    %11 = vector.load %arg2[%c0_9, %c0_10, %c0_11] : memref<4x8x128xf32, #tpu.memory_space<vmem>>, vector<1x8x128xf32>
    %12 = vector.shape_cast %11 : vector<1x8x128xf32> to vector<8x128xf32>
    %c1_12 = arith.constant 1 : index
    %c0_13 = arith.constant 0 : index
    %c0_14 = arith.constant 0 : index
    %13 = vector.load %arg2[%c1_12, %c0_13, %c0_14] : memref<4x8x128xf32, #tpu.memory_space<vmem>>, vector<1x8x128xf32>
    %14 = vector.shape_cast %13 : vector<1x8x128xf32> to vector<8x128xf32>
    %c2_15 = arith.constant 2 : index
    %c0_16 = arith.constant 0 : index
    %c0_17 = arith.constant 0 : index
    %15 = vector.load %arg2[%c2_15, %c0_16, %c0_17] : memref<4x8x128xf32, #tpu.memory_space<vmem>>, vector<1x8x128xf32>
    %16 = vector.shape_cast %15 : vector<1x8x128xf32> to vector<8x128xf32>
    %c3_18 = arith.constant 3 : index
    %c0_19 = arith.constant 0 : index
    %c0_20 = arith.constant 0 : index
    %17 = vector.load %arg2[%c3_18, %c0_19, %c0_20] : memref<4x8x128xf32, #tpu.memory_space<vmem>>, vector<1x8x128xf32>
    %18 = vector.shape_cast %17 : vector<1x8x128xf32> to vector<8x128xf32>
    %19 = arith.mulf %4, %4 : vector<8x128xf32>
    %20 = arith.mulf %6, %6 : vector<8x128xf32>
    %21 = arith.addf %19, %20 : vector<8x128xf32>
    %22 = arith.mulf %8, %8 : vector<8x128xf32>
    %23 = arith.addf %21, %22 : vector<8x128xf32>
    %24 = arith.mulf %10, %10 : vector<8x128xf32>
    %25 = arith.addf %23, %24 : vector<8x128xf32>
    %26 = math.rsqrt %25 : vector<8x128xf32>
    %27 = arith.mulf %12, %12 : vector<8x128xf32>
    %28 = arith.mulf %14, %14 : vector<8x128xf32>
    %29 = arith.addf %27, %28 : vector<8x128xf32>
    %30 = arith.mulf %16, %16 : vector<8x128xf32>
    %31 = arith.addf %29, %30 : vector<8x128xf32>
    %32 = arith.mulf %18, %18 : vector<8x128xf32>
    %33 = arith.addf %31, %32 : vector<8x128xf32>
    %34 = math.rsqrt %33 : vector<8x128xf32>
    %35 = arith.mulf %4, %26 : vector<8x128xf32>
    %36 = arith.mulf %6, %26 : vector<8x128xf32>
    %37 = arith.mulf %8, %26 : vector<8x128xf32>
    %38 = arith.mulf %10, %26 : vector<8x128xf32>
    %39 = arith.mulf %12, %34 : vector<8x128xf32>
    %40 = arith.mulf %14, %34 : vector<8x128xf32>
    %41 = arith.mulf %16, %34 : vector<8x128xf32>
    %42 = arith.mulf %18, %34 : vector<8x128xf32>
    %cst = arith.constant 0.000000e+00 : f32
    %43 = vector.broadcast %cst : f32 to vector<8x128xf32>
    %44 = arith.subf %43, %35 : vector<8x128xf32>
    %cst_21 = arith.constant 0.000000e+00 : f32
    %45 = vector.broadcast %cst_21 : f32 to vector<8x128xf32>
    %46 = arith.subf %45, %36 : vector<8x128xf32>
    %cst_22 = arith.constant 0.000000e+00 : f32
    %47 = vector.broadcast %cst_22 : f32 to vector<8x128xf32>
    %48 = arith.subf %47, %37 : vector<8x128xf32>
    %49 = arith.mulf %38, %39 : vector<8x128xf32>
    %50 = arith.mulf %42, %44 : vector<8x128xf32>
    %51 = arith.addf %49, %50 : vector<8x128xf32>
    %52 = arith.mulf %46, %41 : vector<8x128xf32>
    %53 = arith.mulf %48, %40 : vector<8x128xf32>
    %54 = arith.subf %52, %53 : vector<8x128xf32>
    %55 = arith.addf %51, %54 : vector<8x128xf32>
    %56 = arith.mulf %38, %40 : vector<8x128xf32>
    %57 = arith.mulf %42, %46 : vector<8x128xf32>
    %58 = arith.addf %56, %57 : vector<8x128xf32>
    %59 = arith.mulf %48, %39 : vector<8x128xf32>
    %60 = arith.mulf %44, %41 : vector<8x128xf32>
    %61 = arith.subf %59, %60 : vector<8x128xf32>
    %62 = arith.addf %58, %61 : vector<8x128xf32>
    %63 = arith.mulf %38, %41 : vector<8x128xf32>
    %64 = arith.mulf %42, %48 : vector<8x128xf32>
    %65 = arith.addf %63, %64 : vector<8x128xf32>
    %66 = arith.mulf %44, %40 : vector<8x128xf32>
    %67 = arith.mulf %46, %39 : vector<8x128xf32>
    %68 = arith.subf %66, %67 : vector<8x128xf32>
    %69 = arith.addf %65, %68 : vector<8x128xf32>
    %70 = arith.mulf %38, %42 : vector<8x128xf32>
    %71 = arith.mulf %44, %39 : vector<8x128xf32>
    %72 = arith.subf %70, %71 : vector<8x128xf32>
    %73 = arith.mulf %46, %40 : vector<8x128xf32>
    %74 = arith.subf %72, %73 : vector<8x128xf32>
    %75 = arith.mulf %48, %41 : vector<8x128xf32>
    %76 = arith.subf %74, %75 : vector<8x128xf32>
    %77 = arith.mulf %55, %55 : vector<8x128xf32>
    %78 = arith.mulf %62, %62 : vector<8x128xf32>
    %79 = arith.addf %77, %78 : vector<8x128xf32>
    %80 = arith.mulf %69, %69 : vector<8x128xf32>
    %81 = arith.addf %79, %80 : vector<8x128xf32>
    %82 = math.sqrt %81 : vector<8x128xf32>
    %83 = math.absf %76 : vector<8x128xf32>
    %84 = math.atan2 %82, %83 : vector<8x128xf32>
    %cst_23 = arith.constant 2.000000e+00 : f32
    %85 = vector.broadcast %cst_23 : f32 to vector<8x128xf32>
    %86 = arith.mulf %85, %84 : vector<8x128xf32>
    %87 = arith.mulf %86, %86 : vector<8x128xf32>
    %c0_24 = arith.constant 0 : index
    %c0_25 = arith.constant 0 : index
    %88 = vector.load %arg3[%c0_24, %c0_25] : memref<1x1xf32, #tpu.memory_space<vmem>>, vector<1x1xf32>
    %89 = vector.shape_cast %87 : vector<8x128xf32> to vector<1x8x128xf32>
    %cst_26 = arith.constant dense<0.000000e+00> : vector<1xf32>
    %90 = vector.multi_reduction <add>, %89, %cst_26 [1, 2] : vector<1x8x128xf32> to vector<1xf32>
    %91 = vector.shape_cast %90 : vector<1xf32> to vector<1x1x1xf32>
    %92 = vector.extract %91[0, 0, 0] : f32 from vector<1x1x1xf32>
    %93 = vector.broadcast %92 : f32 to vector<1x1xf32>
    %94 = arith.addf %88, %93 : vector<1x1xf32>
    %c0_27 = arith.constant 0 : index
    %c0_28 = arith.constant 0 : index
    %95 = vector.load %arg3[%c0_27, %c0_28] : memref<1x1xf32, #tpu.memory_space<vmem>>, vector<1x1xf32>
    tpu.vector_store %arg3[%c0_27, %c0_28], %94 {strides = array<i32>} : memref<1x1xf32, #tpu.memory_space<vmem>>, vector<1x1xf32>,
    return
  }
  func.func @transform_0(%arg0: i32) -> (i32, i32, i32) {
    %c0_i32 = arith.constant 0 : i32
    %c0_i32_0 = arith.constant 0 : i32
    %c0_i32_1 = arith.constant 0 : i32
    return %c0_i32, %arg0, %c0_i32_0 : i32, i32, i32
  }
  func.func @transform_1(%arg0: i32) -> (i32, i32, i32) {
    %c0_i32 = arith.constant 0 : i32
    %c0_i32_0 = arith.constant 0 : i32
    %c0_i32_1 = arith.constant 0 : i32
    return %c0_i32, %arg0, %c0_i32_0 : i32, i32, i32
  }
  func.func @transform_2(%arg0: i32) -> (i32, i32) {
    %c0_i32 = arith.constant 0 : i32
    %c0_i32_0 = arith.constant 0 : i32
    %c0_i32_1 = arith.constant 0 : i32
    return %c0_i32, %c0_i32_0 : i32, i32
  }
}

</mosaic_0001>

<llo_original>
// kernel: tpu_custom_call.1
$region0: #{tpu_custom_call.1}
  #allocation0 [shape = 'u32[]', space=smem, size = 0x4, offset = 0x4, fixed_abs, tag = 'smem constant byte address 0x4 - core index']
  #allocation1 [shape = 'u32[72,128]{1,0:T(1,128)}', space=vmem, size = 0x9000, scoped, tag = 'internal scratch']
  %s0 = inlined_call_operand.hbm [shape: f32[4,8,128], index: 0, kind: input, shape index: {}]
  %s1 = inlined_call_operand.hbm [shape: f32[4,8,128], index: 1, kind: input, shape index: {}]
  %s2 = inlined_call_operand.hbm [shape: f32[1,1], index: 2, kind: output, shape index: {}]
  %s3 = sld [smem:[#allocation0]]
  $region30: #{tpu_custom_call.1} parent=0
    _
  %s5 = ssub.s32 1, %s3
  %s6 = scalar_select 0, %s5, %s3
  $region1: #{tpu_custom_call.1} parent=0
    #allocation2 [shape = 'u8[16384]{0}', space=vmem, size = 0x4000, scoped, tag = 'input window, operand 0, single buffered']
    #allocation3 [shape = 's32[1]{0}', space=sflag, size = 0x4, scoped, tag = 'scoped memory for tpu_custom_call.1']
    #allocation4 [shape = 's32[1]{0}', space=sflag, size = 0x4, scoped, tag = 'scoped memory for tpu_custom_call.1']
    #allocation5 [shape = 'u8[16384]{0}', space=vmem, size = 0x4000, scoped, tag = 'input window, operand 1, single buffered']
    #allocation6 [shape = 's32[1]{0}', space=sflag, size = 0x4, scoped, tag = 'scoped memory for tpu_custom_call.1']
    #allocation7 [shape = 'u8[512]{0}', space=vmem, size = 0x400, scoped, tag = 'output window, operand 0, single buffered']
    %7 = vsyncpa [#allocation3], 0
    %8 = vsyncpa [#allocation6], 0
    %9 = vsyncpa [#allocation4], 0
    // Predicated region
    $region2: #{tpu_custom_call.1} parent=1 // pred_check
      _
    $region3: #{tpu_custom_call.1} parent=1 // pred_check_branch
      %11 = sbr.rel (0) target = $region5
    $region4: #{tpu_custom_call.1} parent=1 // pred_region
      %13 = vsyncadd [#allocation3], 0
      %s14 = sshll.u32 %s0, 4
      %s15 = int_to_ptr.hbm [resolvable:$true] %s14
      %s16 = sshll.u32 [#allocation2], 4
      %s17 = int_to_ptr.vmem [resolvable:$true] %s16
      %22 = dma.hbm_to_vmem [thread:$0]  %s15, 512, %s17, [#allocation3], 128, 128, 8
    $region5: #{tpu_custom_call.1} parent=1 // pred_fallthru
      _
    // Predicated region
    $region6: #{tpu_custom_call.1} parent=1 // pred_check
      _
    $region7: #{tpu_custom_call.1} parent=1 // pred_check_branch
      %24 = sbr.rel (0) target = $region9
    $region8: #{tpu_custom_call.1} parent=1 // pred_region
      %26 = vsyncadd [#allocation6], 0
      %s27 = sshll.u32 %s1, 4
      %s28 = int_to_ptr.hbm [resolvable:$true] %s27
      %s29 = sshll.u32 [#allocation5], 4
      %s30 = int_to_ptr.vmem [resolvable:$true] %s29
      %35 = dma.hbm_to_vmem [thread:$0]  %s28, 512, %s30, [#allocation6], 128, 128, 8
    $region9: #{tpu_custom_call.1} parent=1 // pred_fallthru
      _
    // Predicated region
    $region10: #{tpu_custom_call.1} parent=1 // pred_check
      _
    $region11: #{tpu_custom_call.1} parent=1 // pred_check_branch
      %37 = sbr.rel (0) target = $region13
    $region12: #{tpu_custom_call.1} parent=1 // pred_region
      %39 = dma.done [#allocation3], 512
    $region13: #{tpu_custom_call.1} parent=1 // pred_fallthru
      _
    // Predicated region
    $region14: #{tpu_custom_call.1} parent=1 // pred_check
      _
    $region15: #{tpu_custom_call.1} parent=1 // pred_check_branch
      %41 = sbr.rel (0) target = $region17
    $region16: #{tpu_custom_call.1} parent=1 // pred_region
      %43 = dma.done [#allocation6], 512
    $region17: #{tpu_custom_call.1} parent=1 // pred_fallthru
      _
    %p44 = scmp.eq.s32.totalorder 0, 0
    // Predicated region
    $region18: #{tpu_custom_call.1} parent=1 // pred_check
      %p45 = pneg %p44
    $region19: #{tpu_custom_call.1} parent=1 // pred_check_branch
      %47 = sbr.rel (%p45) target = $region21
    $region20: #{tpu_custom_call.1} parent=1 // pred_region
      %vm48 = vcmask 0
      %49 = vst.msk [vmem:[#allocation7] sm:$0x1] %vm48, 0.0
    $region21: #{tpu_custom_call.1} parent=1 // pred_fallthru
      _
    %v50 = vld [vmem:[#allocation2] sm:$0xff]
    %s51 = scalar_lea.vmem [#allocation2], 8
    %v52 = vld [vmem:[%s51] sm:$0xff]
    %s53 = scalar_lea.vmem [#allocation2], 16
    %v54 = vld [vmem:[%s53] sm:$0xff]
    %s55 = scalar_lea.vmem [#allocation2], 24
    %v56 = vld [vmem:[%s55] sm:$0xff]
    %v57 = vld [vmem:[#allocation5] sm:$0xff]
    %s58 = scalar_lea.vmem [#allocation5], 8
    %v59 = vld [vmem:[%s58] sm:$0xff]
    %s60 = scalar_lea.vmem [#allocation5], 16
    %v61 = vld [vmem:[%s60] sm:$0xff]
    %s62 = scalar_lea.vmem [#allocation5], 24
    %v63 = vld [vmem:[%s62] sm:$0xff]
    %v64 = vmul.f32 %v50, %v50
    %v65 = vmul.f32 %v52, %v52
    %v66 = vadd.f32 %v64, %v65
    %v67 = vmul.f32 %v54, %v54
    %v68 = vadd.f32 %v66, %v67
    %v69 = vmul.f32 %v56, %v56
    %v70 = vadd.f32 %v68, %v69
    %v71 = vrsqrt.pop %v70
    %v72 = vmul.f32 %v71, %v70
    %v73 = vmul.f32 %v72, %v71
    %v74 = vmul.f32 0.5, %v73
    %v75 = vsub.f32 1.5, %v74
    %v76 = vmul.f32 %v71, %v75
    %vm77 = vweird.f32 %v70
    %vm78 = vweird.f32 %v71
    %vm79 = vmor %vm77, %vm78
    %v80 = vsel %vm79, %v71, %v76
    %v81 = vmul.f32 %v57, %v57
    %v82 = vmul.f32 %v59, %v59
    %v83 = vadd.f32 %v81, %v82
    %v84 = vmul.f32 %v61, %v61
    %v85 = vadd.f32 %v83, %v84
    %v86 = vmul.f32 %v63, %v63
    %v87 = vadd.f32 %v85, %v86
    %v88 = vrsqrt.pop %v87
    %v89 = vmul.f32 %v88, %v87
    %v90 = vmul.f32 %v89, %v88
    %v91 = vmul.f32 0.5, %v90
    %v92 = vsub.f32 1.5, %v91
    %v93 = vmul.f32 %v88, %v92
    %vm94 = vweird.f32 %v87
    %vm95 = vweird.f32 %v88
    %vm96 = vmor %vm94, %vm95
    %v97 = vsel %vm96, %v88, %v93
    %v98 = vmul.f32 %v50, %v80
    %v99 = vmul.f32 %v52, %v80
    %v100 = vmul.f32 %v54, %v80
    %v101 = vmul.f32 %v56, %v80
    %v102 = vmul.f32 %v57, %v97
    %v103 = vmul.f32 %v59, %v97
    %v104 = vmul.f32 %v61, %v97
    %v105 = vmul.f32 %v63, %v97
    %v106 = vsub.f32 0.0, %v98
    %v107 = vsub.f32 0.0, %v99
    %v108 = vsub.f32 0.0, %v100
    %v109 = vmul.f32 %v101, %v102
    %v110 = vmul.f32 %v105, %v106
    %v111 = vadd.f32 %v109, %v110
    %v112 = vmul.f32 %v107, %v104
    %v113 = vmul.f32 %v108, %v103
    %v114 = vsub.f32 %v112, %v113
    %v115 = vadd.f32 %v111, %v114
    %v116 = vmul.f32 %v101, %v103
    %v117 = vmul.f32 %v105, %v107
    %v118 = vadd.f32 %v116, %v117
    %v119 = vmul.f32 %v108, %v102
    %v120 = vmul.f32 %v106, %v104
    %v121 = vsub.f32 %v119, %v120
    %v122 = vadd.f32 %v118, %v121
    %v123 = vmul.f32 %v101, %v104
    %v124 = vmul.f32 %v105, %v108
    %v125 = vadd.f32 %v123, %v124
    %v126 = vmul.f32 %v106, %v103
    %v127 = vmul.f32 %v107, %v102
    %v128 = vsub.f32 %v126, %v127
    %v129 = vadd.f32 %v125, %v128
    %v130 = vmul.f32 %v101, %v105
    %v131 = vmul.f32 %v106, %v102
    %v132 = vsub.f32 %v130, %v131
    %v133 = vmul.f32 %v107, %v103
    %v134 = vsub.f32 %v132, %v133
    %v135 = vmul.f32 %v108, %v104
    %v136 = vsub.f32 %v134, %v135
    %v137 = vmul.f32 %v115, %v115
    %v138 = vmul.f32 %v122, %v122
    %v139 = vadd.f32 %v137, %v138
    %v140 = vmul.f32 %v129, %v129
    %v141 = vadd.f32 %v139, %v140
    %v142 = vrsqrt.pop %v141
    %v143 = vmul.f32 %v142, %v141
    %v144 = vmul.f32 %v143, %v142
    %v145 = vmul.f32 0.5, %v144
    %v146 = vsub.f32 1.5, %v145
    %v147 = vmul.f32 %v142, %v146
    %v148 = vmul.f32 %v141, %v147
    %vm149 = vcmp.eq.f32.partialorder %v141, inf
    %v150 = vsel %vm149, %v141, %v148
    %vm151 = vcmp.eq.f32.partialorder %v141, 0.0
    %v152 = vand.u32 %v141, 2147483648
    %v153 = vsel %vm151, %v152, %v150
    %v154 = vand.u32 2147483647, %v136
    %v155 = vand.u32 2147483647, %v154
    %v156 = vand.u32 2147483647, %v153
    %v157 = vmin.f32 %v155, %v156
    %v158 = vmax.f32 %v155, %v156
    %v159 = vrcp.pop %v158
    %v160 = vmul.f32 %v158, %v159
    %v161 = vsub.f32 1.0, %v160
    %v162 = vmul.f32 %v159, %v161
    %v163 = vadd.f32 %v159, %v162
    %vm164 = vweird.f32 %v158
    %vm165 = vweird.f32 %v159
    %vm166 = vmor %vm164, %vm165
    %v167 = vsel %vm166, %v159, %v163
    %v168 = vand.u32 2147483647, %v158
    %vm169 = vcmp.eq.f32.partialorder %v168, 8.507059e+37
    %v170 = vand.u32 %v158, 2147483648
    %v171 = vor.u32 1.1754944e-38, %v170
    %v172 = vsel %vm169, %v171, %v167
    %v173 = vmul.f32 %v157, %v172
    %v174 = vmul.f32 %v173, %v173
    %v175 = vmul.f32 0.002785687, %v174
    %v176 = vadd.f32 %v175, -0.015866
    %v177 = vmul.f32 %v176, %v174
    %v178 = vadd.f32 %v177, 0.04247222
    %v179 = vmul.f32 %v178, %v174
    %v180 = vadd.f32 %v179, -0.074975304
    %v181 = vmul.f32 %v180, %v174
    %v182 = vadd.f32 %v181, 0.1064488
    %v183 = vmul.f32 %v182, %v174
    %v184 = vadd.f32 %v183, -0.14207031
    %v185 = vmul.f32 %v184, %v174
    %v186 = vadd.f32 %v185, 0.19993454
    %v187 = vmul.f32 %v186, %v174
    %v188 = vadd.f32 %v187, -0.33333147
    %v189 = vmul.f32 %v188, %v174
    %v190 = vmul.f32 %v189, %v173
    %v191 = vadd.f32 %v190, %v173
    %vm192 = vcmp.gt.f32.partialorder %v156, %v155
    %v193 = vsub.f32 1.5707964, %v191
    %v194 = vsel %vm192, %v193, %v191
    %vm195 = vcmp.lt.f32.partialorder %v154, 0.0
    %v196 = vsub.f32 3.1415927, %v194
    %v197 = vsel %vm195, %v196, %v194
    %vm198 = vcmp.eq.f32.partialorder %v153, 0.0
    %v199 = vsel %vm198, 0.0, %v197
    %vm200 = vcmp.ne.f32.partialorder %v154, %v154
    %vm201 = vcmp.ne.f32.partialorder %v153, %v153
    %vm202 = vmor %vm200, %vm201
    %v203 = vsel %vm202, nan, %v199
    %vm204 = vcmp.lt.f32.partialorder %v154, 0.0
    %v205 = vsel %vm204, 2.3561945, 0.7853982
    %vm206 = vcmp.eq.s32.totalorder %v155, inf
    %vm207 = vcmp.eq.s32.totalorder %v156, inf
    %vm208 = vmand %vm206, %vm207
    %v209 = vsel %vm208, %v205, %v203
    %v210 = vand.u32 2147483647, %v209
    %v211 = vand.u32 %v153, 2147483648
    %v212 = vor.u32 %v210, %v211
    %v213 = vmul.f32 %v212, 2.0
    %v214 = vmul.f32 %v213, %v213
    %v215 = vld [vmem:[#allocation7] sm:$0x1]
    %216 = vadd.xlane.f32.xlu0 %v214
    %v217 = vpop.xlane.xlu0 %216
    %v218 = vrot.slane %v217, 4
    %v219 = vadd.f32 %v217, %v218
    %v220 = vrot.slane %v219, 2
    %v221 = vadd.f32 %v219, %v220
    %v222 = vrot.slane %v221, 1
    %v223 = vadd.f32 %v221, %v222
    %s224 = vtos %v223
    %v225 = vstv %s224
    %v226 = vadd.f32 %v215, %v225
    %vm227 = vcmask 0
    %228 = vst.msk [vmem:[#allocation7] sm:$0x1] %vm227, %v226
    // Predicated region
    $region22: #{tpu_custom_call.1} parent=1 // pred_check
      _
    $region23: #{tpu_custom_call.1} parent=1 // pred_check_branch
      %230 = sbr.rel (0) target = $region25
    $region24: #{tpu_custom_call.1} parent=1 // pred_region
      %232 = vsyncadd [#allocation4], 0
      %s234 = sshll.u32 [#allocation7], 4
      %s235 = int_to_ptr.vmem [resolvable:$true] %s234
      %s236 = sshll.u32 %s2, 4
      %s237 = int_to_ptr.hbm [resolvable:$true] %s236
      %239 = dma.vmem_to_hbm [thread:$0]  %s235, 16, %s237, [#allocation4]
    $region25: #{tpu_custom_call.1} parent=1 // pred_fallthru
      _
    // Predicated region
    $region26: #{tpu_custom_call.1} parent=1 // pred_check
      _
    $region27: #{tpu_custom_call.1} parent=1 // pred_check_branch
      %241 = sbr.rel (0) target = $region29
    $region28: #{tpu_custom_call.1} parent=1 // pred_region
      %243 = dma.done [#allocation4], 16
    $region29: #{tpu_custom_call.1} parent=1 // pred_fallthru
      _
    %244 = vsyncpa [#allocation3], 1
    %245 = vsyncpa [#allocation6], 1
    %246 = vsyncpa [#allocation4], 1

</llo_original>
